<compile_context>
chip_gen: v6e
topology: v6e:2x2x1
jax: 0.10.0
libtpu: 0.0.40
codegen_flags: <defaults>
</compile_context>

<pallas_src>
import functools

import jax
import jax.numpy as jnp
from jax.experimental import pallas as pl
from jax.experimental.pallas import tpu as pltpu


def _round_up(x, m):
    return (x + m - 1) // m * m


def _conv5x5_kernel(x_ref, w_ref, scale_ref, bias_ref, o_ref, *, M, Ws,
                    apply_relu):
    """Fused kw-grouped 5x5 conv + scale/bias (+ ReLU) for one row tile.

    x_ref:     (1, 1, (TH+4)*Ws, 5*Ci)  kw-im2col'ed input rows (incl. halo)
    w_ref:     (5, 5*Ci, Co)            weights grouped as [kh, kw*Ci+ci, co]
    scale_ref: (1, Co)                  folded BN scale (ones for last conv)
    bias_ref:  (1, Co)                  folded BN bias + conv bias
    o_ref:     (1, 1, M, Co)            M = TH*Ws flattened output rows
    """
    co = w_ref.shape[-1]
    # Two partial accumulators: keeps the post-matmul VPU adds off one long
    # serial chain (helps v7x MRB accumulation / ILP); only 5 matmuls remain
    # after kw-grouping so the extra vreg cost is modest.
    acc0 = jnp.zeros((M, co), jnp.float32)
    acc1 = jnp.zeros((M, co), jnp.float32)
    for kh in range(5):
        # Static, sublane-aligned shift (Ws % 8 == 0) -> clean vector loads.
        patch = x_ref[0, 0, pl.ds(kh * Ws, M), :]               # (M, 5*Ci)
        d = jnp.dot(patch, w_ref[kh],
                    preferred_element_type=jnp.float32)         # MXU, K=5*Ci
        if kh % 2 == 0:
            acc0 = acc0 + d
        else:
            acc1 = acc1 + d
    y = (acc0 + acc1) * scale_ref[...] + bias_ref[...]          # VPU epilogue
    if apply_relu:
        y = jnp.maximum(y, 0.0)
    o_ref[0, 0] = y.astype(o_ref.dtype)


def _conv5x5_fused(x_nhwc, w_oihw, scale, bias, *, apply_relu, compute_dtype,
                   out_dtype, row_tile=None):
    """y = [relu](scale * conv5x5_same(x) + bias); NHWC in / NHWC out."""
    N, H, W, Ci = x_nhwc.shape
    Co = w_oihw.shape[0]
    K = 5 * Ci

    # Width padded to a sublane multiple so kh*Ws shifts stay (8,128)-aligned.
    Ws = _round_up(W, 8)
    # ~128 flattened output rows per grid step (f32 accumulator ~16 vregs).
    # TODO(synk): very wide images (Ws >= 128) fall back to TH=1; those would
    # also want width tiling to bound the halo-duplication overhead.
    TH = row_tile if row_tile is not None else min(H, max(1, 128 // Ws))
    T = -(-H // TH)                       # number of row tiles
    Hp = T * TH + 4                       # padded image rows incl. last halo

    # 'same' zero-pad, then im2col the 5 kw taps onto the channel/lane axis:
    #   xk[n, hp, w, kw*Ci + ci] = xpad[n, hp, w + kw, ci]
    xp = jnp.pad(x_nhwc, ((0, 0), (2, 2), (2, 2), (0, 0)))       # (N,H+4,W+4,Ci)
    xk = jnp.concatenate([xp[:, :, kw:kw + W, :] for kw in range(5)], axis=-1)
    xk = jnp.pad(xk, ((0, 0), (0, Hp - (H + 4)), (0, Ws - W), (0, 0)))
    # Explicit overlapping row tiles (4 halo rows duplicated in HBM — cheap)
    # so plain Blocked BlockSpecs can express the halo; flatten rows per tile.
    xt = jnp.stack([xk[:, t * TH:t * TH + TH + 4] for t in range(T)], axis=1)
    xt = xt.reshape(N, T, (TH + 4) * Ws, K).astype(compute_dtype)

    # (Co, Ci, 5, 5) -> (5, 5*Ci, Co), same kw-major / ci-minor ordering.
    wg = jnp.transpose(w_oihw, (2, 3, 1, 0)).reshape(5, K, Co)
    scale2 = scale.reshape(1, Co).astype(jnp.float32)
    bias2 = bias.reshape(1, Co).astype(jnp.float32)

    # Last conv has Co=1: pad only to 8 lanes (not 128) so we don't write and
    # re-read 128x the needed output bytes; extra channels cropped below.
    Co_p = max(Co, 8)
    if Co_p != Co:
        wg = jnp.pad(wg, ((0, 0), (0, 0), (0, Co_p - Co)))
        scale2 = jnp.pad(scale2, ((0, 0), (0, Co_p - Co)))
        bias2 = jnp.pad(bias2, ((0, 0), (0, Co_p - Co)))
    wg = wg.astype(compute_dtype)

    M = TH * Ws
    Rt = (TH + 4) * Ws
    kernel = functools.partial(_conv5x5_kernel, M=M, Ws=Ws,
                               apply_relu=apply_relu)

    out = pl.pallas_call(
        kernel,
        out_shape=jax.ShapeDtypeStruct((N, T, M, Co_p), out_dtype),
        grid_spec=pltpu.PrefetchScalarGridSpec(
            num_scalar_prefetch=0,
            grid=(N, T),
            in_specs=[
                pl.BlockSpec((1, 1, Rt, K), lambda n, t: (n, t, 0, 0)),
                # Grid-invariant blocks: fetched once, reused every step.
                # TODO(synk): pipeline_mode=pl.Buffered(1) would drop the
                # redundant second weight buffer; only matters with very
                # large row tiles on v7x's 64 MiB VMEM.
                pl.BlockSpec((5, K, Co_p), lambda n, t: (0, 0, 0)),
                pl.BlockSpec((1, Co_p), lambda n, t: (0, 0)),
                pl.BlockSpec((1, Co_p), lambda n, t: (0, 0)),
            ],
            out_specs=pl.BlockSpec((1, 1, M, Co_p), lambda n, t: (n, t, 0, 0)),
        ),
        compiler_params=pltpu.CompilerParams(
            # 2-D parallel grid: both v7x TensorCores get work even for N<=2.
            dimension_semantics=("parallel", "parallel"),
        ),
    )(xt, wg, scale2, bias2)

    # Drop row-tile remainder rows, width-alignment columns, padded channels.
    return out.reshape(N, T * TH, Ws, Co_p)[:, :H, :W, :Co]


def _bn_fold(gamma, beta, mean, var, conv_bias, eps=1e-5):
    """Fold eval-mode BatchNorm + conv bias into per-channel scale & bias."""
    inv = gamma / jnp.sqrt(var + eps)
    return inv, beta + (conv_bias - mean) * inv


def context_net_forward(x_nchw, params, *, compute_dtype=jnp.bfloat16):
    """ContextNet forward: (N, C, H, W) -> (N, 1, H, W) (PyTorch NCHW I/O)."""
    # TODO(synk): BatchNorm is applied in eval mode (running stats folded into
    # scale/bias); training-mode per-batch statistics are not computed in-kernel.
    # TODO(synk): the three layers remain separate pallas_calls; a single fused
    # call (intermediates in VMEM scratch) would remove two HBM round trips but
    # requires growing-halo recompute per row tile.
    x = jnp.transpose(x_nchw, (0, 2, 3, 1))                       # NHWC

    s1, b1 = _bn_fold(params["bn1_gamma"], params["bn1_beta"],
                      params["bn1_mean"], params["bn1_var"], params["b1"])
    x = _conv5x5_fused(x, params["w1"], s1, b1, apply_relu=True,
                       compute_dtype=compute_dtype, out_dtype=compute_dtype)

    s2, b2 = _bn_fold(params["bn2_gamma"], params["bn2_beta"],
                      params["bn2_mean"], params["bn2_var"], params["b2"])
    x = _conv5x5_fused(x, params["w2"], s2, b2, apply_relu=True,
                       compute_dtype=compute_dtype, out_dtype=compute_dtype)

    s3 = jnp.ones_like(params["b3"])
    x = _conv5x5_fused(x, params["w3"], s3, params["b3"], apply_relu=False,
                       compute_dtype=compute_dtype, out_dtype=jnp.float32)

    return jnp.transpose(x, (0, 3, 1, 2))                         # back to NCHW


def _reference_forward(x, p):
    """Pure-JAX reference (lax conv) in NCHW for correctness checking."""
    def conv(x, w, b):
        y = jax.lax.conv_general_dilated(
            x, w, window_strides=(1, 1), padding=((2, 2), (2, 2)),
            dimension_numbers=("NCHW", "OIHW", "NCHW"),
            precision=jax.lax.Precision.HIGHEST)
        return y + b[None, :, None, None]

    def bn(y, g, bt, m, v, eps=1e-5):
        inv = g / jnp.sqrt(v + eps)
        return (y - m[None, :, None, None]) * inv[None, :, None, None] \
            + bt[None, :, None, None]

    y = jax.nn.relu(bn(conv(x, p["w1"], p["b1"]), p["bn1_gamma"],
                       p["bn1_beta"], p["bn1_mean"], p["bn1_var"]))
    y = jax.nn.relu(bn(conv(y, p["w2"], p["b2"]), p["bn2_gamma"],
                       p["bn2_beta"], p["bn2_mean"], p["bn2_var"]))
    return conv(y, p["w3"], p["b3"])


if __name__ == "__main__":
    key = jax.random.PRNGKey(0)
    ks = jax.random.split(key, 16)
    N, C, H, W = 2, 4, 16, 16
    x = jax.random.normal(ks[0], (N, C, H, W), dtype=jnp.float32)

    def uinit(k, shape, fan_in):
        bound = 1.0 / (fan_in ** 0.5)
        return jax.random.uniform(k, shape, jnp.float32, -bound, bound)

    params = {
        "w1": uinit(ks[1], (64, C, 5, 5), C * 25),
        "b1": uinit(ks[2], (64,), C * 25),
        "bn1_gamma": jax.random.uniform(ks[3], (64,), jnp.float32, 0.5, 1.5),
        "bn1_beta": 0.1 * jax.random.normal(ks[4], (64,), jnp.float32),
        "bn1_mean": 0.1 * jax.random.normal(ks[5], (64,), jnp.float32),
        "bn1_var": jax.random.uniform(ks[6], (64,), jnp.float32, 0.5, 1.5),
        "w2": uinit(ks[7], (64, 64, 5, 5), 64 * 25),
        "b2": uinit(ks[8], (64,), 64 * 25),
        "bn2_gamma": jax.random.uniform(ks[9], (64,), jnp.float32, 0.5, 1.5),
        "bn2_beta": 0.1 * jax.random.normal(ks[10], (64,), jnp.float32),
        "bn2_mean": 0.1 * jax.random.normal(ks[11], (64,), jnp.float32),
        "bn2_var": jax.random.uniform(ks[12], (64,), jnp.float32, 0.5, 1.5),
        "w3": uinit(ks[13], (1, 64, 5, 5), 64 * 25),
        "b3": uinit(ks[14], (1,), 64 * 25),
    }

    # 1) Exact-integer indexing check (exact in bf16, any matmul precision):
    #    odd H/W/Ci exercise width padding, row-tile remainder and cropping.
    ki = jax.random.split(ks[15], 2)
    Hx, Wx, Cix, Cox = 11, 13, 3, 64
    xi = jax.random.randint(ki[0], (N, Hx, Wx, Cix), -2, 3).astype(jnp.float32)
    wi = jax.random.randint(ki[1], (Cox, Cix, 5, 5), -2, 3).astype(jnp.float32)
    conv_int = jax.jit(functools.partial(
        _conv5x5_fused, apply_relu=False,
        compute_dtype=jnp.bfloat16, out_dtype=jnp.float32))
    y_int = jax.block_until_ready(
        conv_int(xi, wi, jnp.ones((Cox,)), jnp.zeros((Cox,))))
    y_int_ref = jax.lax.conv_general_dilated(
        jnp.transpose(xi, (0, 3, 1, 2)), wi, (1, 1), ((2, 2), (2, 2)),
        dimension_numbers=("NCHW", "OIHW", "NCHW"),
        precision=jax.lax.Precision.HIGHEST)
    y_int_ref = jnp.transpose(y_int_ref, (0, 2, 3, 1))
    err_int = float(jnp.max(jnp.abs(y_int - y_int_ref)))
    assert err_int < 1e-5, f"integer conv indexing check failed: {err_int}"

    y_ref = jax.block_until_ready(_reference_forward(x, params))

    # 2) Full network, f32 compute path (tighter tolerance than before).
    fwd_f32 = jax.jit(functools.partial(context_net_forward,
                                        compute_dtype=jnp.float32))
    y_f32 = jax.block_until_ready(fwd_f32(x, params))
    err_f32 = float(jnp.max(jnp.abs(y_f32 - y_ref)))
    assert err_f32 < 1e-2, f"f32 path max abs error vs reference: {err_f32}"

    # 3) Full network, bf16 compute path (the optimized path).
    fwd = jax.jit(functools.partial(context_net_forward,
                                    compute_dtype=jnp.bfloat16))
    y = jax.block_until_ready(fwd(x, params))
    assert y.shape == (N, 1, H, W), y.shape
    assert y.dtype == jnp.float32, y.dtype
    assert bool(jnp.all(jnp.isfinite(y))), "non-finite output"
    err_bf16 = float(jnp.max(jnp.abs(y - y_ref)))
    assert err_bf16 < 5e-2, f"bf16 path max abs error vs reference: {err_bf16}"

    print("KERNEL_OK")
</pallas_src>

<mosaic_0001>
module attributes {stable_mosaic.version = 11 : i64} {
  func.func @_conv5x5_kernel(%arg0: i32, %arg1: i32, %arg2: memref<1x1x192x15xbf16, #tpu.memory_space<vmem>>, %arg3: memref<5x15x64xbf16, #tpu.memory_space<vmem>>, %arg4: memref<1x64xf32, #tpu.memory_space<vmem>>, %arg5: memref<1x64xf32, #tpu.memory_space<vmem>>, %arg6: memref<1x1x128x64xf32, #tpu.memory_space<vmem>>) attributes {dimension_semantics = [#tpu.dimension_semantics<parallel>, #tpu.dimension_semantics<parallel>], iteration_bounds = array<i64: 2, 2>, scalar_prefetch = 0 : i64, scratch_operands = 0 : i64, tpu.core_type = #tpu.core_type<tc>, window_params = [{transform_indices = @transform_0, window_bounds = array<i64: 1, 1, 192, 15>}, {pipeline_mode = #tpu.pipeline_mode<synchronous>, transform_indices = @transform_1, window_bounds = array<i64: 5, 15, 64>}, {pipeline_mode = #tpu.pipeline_mode<synchronous>, transform_indices = @transform_2, window_bounds = array<i64: 1, 64>}, {pipeline_mode = #tpu.pipeline_mode<synchronous>, transform_indices = @transform_3, window_bounds = array<i64: 1, 64>}, {transform_indices = @transform_4, window_bounds = array<i64: 1, 1, 128, 64>}]} {
    %cst = arith.constant 0.000000e+00 : f32
    %0 = vector.broadcast %cst : f32 to vector<128x64xf32>
    %cst_0 = arith.constant 0.000000e+00 : f32
    %1 = vector.broadcast %cst_0 : f32 to vector<128x64xf32>
    %c0 = arith.constant 0 : index
    %c0_1 = arith.constant 0 : index
    %c0_2 = arith.constant 0 : index
    %c0_3 = arith.constant 0 : index
    %2 = vector.load %arg2[%c0, %c0_1, %c0_2, %c0_3] : memref<1x1x192x15xbf16, #tpu.memory_space<vmem>>, vector<1x1x128x15xbf16>
    %3 = vector.shape_cast %2 : vector<1x1x128x15xbf16> to vector<128x15xbf16>
    %c0_4 = arith.constant 0 : index
    %c0_5 = arith.constant 0 : index
    %c0_6 = arith.constant 0 : index
    %4 = vector.load %arg3[%c0_4, %c0_5, %c0_6] : memref<5x15x64xbf16, #tpu.memory_space<vmem>>, vector<1x15x64xbf16>
    %5 = vector.shape_cast %4 : vector<1x15x64xbf16> to vector<15x64xbf16>
    %cst_7 = arith.constant dense<0.000000e+00> : vector<128x64xf32>
    %6 = tpu.matmul %3, %5, %cst_7 {dimension_numbers = #tpu.dot_dimension_numbers<[1], [0], [0], [1], [0, 0, 1, 1], [], []>} : vector<128x15xbf16>, vector<15x64xbf16>, vector<128x64xf32> -> vector<128x64xf32>
    %7 = arith.addf %0, %6 : vector<128x64xf32>
    %c0_8 = arith.constant 0 : index
    %c0_9 = arith.constant 0 : index
    %c16 = arith.constant 16 : index
    %c0_10 = arith.constant 0 : index
    %8 = vector.load %arg2[%c0_8, %c0_9, %c16, %c0_10] : memref<1x1x192x15xbf16, #tpu.memory_space<vmem>>, vector<1x1x128x15xbf16>
    %9 = vector.shape_cast %8 : vector<1x1x128x15xbf16> to vector<128x15xbf16>
    %c1 = arith.constant 1 : index
    %c0_11 = arith.constant 0 : index
    %c0_12 = arith.constant 0 : index
    %10 = vector.load %arg3[%c1, %c0_11, %c0_12] : memref<5x15x64xbf16, #tpu.memory_space<vmem>>, vector<1x15x64xbf16>
    %11 = vector.shape_cast %10 : vector<1x15x64xbf16> to vector<15x64xbf16>
    %cst_13 = arith.constant dense<0.000000e+00> : vector<128x64xf32>
    %12 = tpu.matmul %9, %11, %cst_13 {dimension_numbers = #tpu.dot_dimension_numbers<[1], [0], [0], [1], [0, 0, 1, 1], [], []>} : vector<128x15xbf16>, vector<15x64xbf16>, vector<128x64xf32> -> vector<128x64xf32>
    %13 = arith.addf %1, %12 : vector<128x64xf32>
    %c0_14 = arith.constant 0 : index
    %c0_15 = arith.constant 0 : index
    %c32 = arith.constant 32 : index
    %c0_16 = arith.constant 0 : index
    %14 = vector.load %arg2[%c0_14, %c0_15, %c32, %c0_16] : memref<1x1x192x15xbf16, #tpu.memory_space<vmem>>, vector<1x1x128x15xbf16>
    %15 = vector.shape_cast %14 : vector<1x1x128x15xbf16> to vector<128x15xbf16>
    %c2 = arith.constant 2 : index
    %c0_17 = arith.constant 0 : index
    %c0_18 = arith.constant 0 : index
    %16 = vector.load %arg3[%c2, %c0_17, %c0_18] : memref<5x15x64xbf16, #tpu.memory_space<vmem>>, vector<1x15x64xbf16>
    %17 = vector.shape_cast %16 : vector<1x15x64xbf16> to vector<15x64xbf16>
    %cst_19 = arith.constant dense<0.000000e+00> : vector<128x64xf32>
    %18 = tpu.matmul %15, %17, %cst_19 {dimension_numbers = #tpu.dot_dimension_numbers<[1], [0], [0], [1], [0, 0, 1, 1], [], []>} : vector<128x15xbf16>, vector<15x64xbf16>, vector<128x64xf32> -> vector<128x64xf32>
    %19 = arith.addf %7, %18 : vector<128x64xf32>
    %c0_20 = arith.constant 0 : index
    %c0_21 = arith.constant 0 : index
    %c48 = arith.constant 48 : index
    %c0_22 = arith.constant 0 : index
    %20 = vector.load %arg2[%c0_20, %c0_21, %c48, %c0_22] : memref<1x1x192x15xbf16, #tpu.memory_space<vmem>>, vector<1x1x128x15xbf16>
    %21 = vector.shape_cast %20 : vector<1x1x128x15xbf16> to vector<128x15xbf16>
    %c3 = arith.constant 3 : index
    %c0_23 = arith.constant 0 : index
    %c0_24 = arith.constant 0 : index
    %22 = vector.load %arg3[%c3, %c0_23, %c0_24] : memref<5x15x64xbf16, #tpu.memory_space<vmem>>, vector<1x15x64xbf16>
    %23 = vector.shape_cast %22 : vector<1x15x64xbf16> to vector<15x64xbf16>
    %cst_25 = arith.constant dense<0.000000e+00> : vector<128x64xf32>
    %24 = tpu.matmul %21, %23, %cst_25 {dimension_numbers = #tpu.dot_dimension_numbers<[1], [0], [0], [1], [0, 0, 1, 1], [], []>} : vector<128x15xbf16>, vector<15x64xbf16>, vector<128x64xf32> -> vector<128x64xf32>
    %25 = arith.addf %13, %24 : vector<128x64xf32>
    %c0_26 = arith.constant 0 : index
    %c0_27 = arith.constant 0 : index
    %c64 = arith.constant 64 : index
    %c0_28 = arith.constant 0 : index
    %26 = vector.load %arg2[%c0_26, %c0_27, %c64, %c0_28] : memref<1x1x192x15xbf16, #tpu.memory_space<vmem>>, vector<1x1x128x15xbf16>
    %27 = vector.shape_cast %26 : vector<1x1x128x15xbf16> to vector<128x15xbf16>
    %c4 = arith.constant 4 : index
    %c0_29 = arith.constant 0 : index
    %c0_30 = arith.constant 0 : index
    %28 = vector.load %arg3[%c4, %c0_29, %c0_30] : memref<5x15x64xbf16, #tpu.memory_space<vmem>>, vector<1x15x64xbf16>
    %29 = vector.shape_cast %28 : vector<1x15x64xbf16> to vector<15x64xbf16>
    %cst_31 = arith.constant dense<0.000000e+00> : vector<128x64xf32>
    %30 = tpu.matmul %27, %29, %cst_31 {dimension_numbers = #tpu.dot_dimension_numbers<[1], [0], [0], [1], [0, 0, 1, 1], [], []>} : vector<128x15xbf16>, vector<15x64xbf16>, vector<128x64xf32> -> vector<128x64xf32>
    %31 = arith.addf %19, %30 : vector<128x64xf32>
    %32 = arith.addf %31, %25 : vector<128x64xf32>
    %c0_32 = arith.constant 0 : index
    %c0_33 = arith.constant 0 : index
    %33 = vector.load %arg4[%c0_32, %c0_33] : memref<1x64xf32, #tpu.memory_space<vmem>>, vector<1x64xf32>
    %34 = vector.broadcast %33 : vector<1x64xf32> to vector<128x64xf32>
    %35 = arith.mulf %32, %34 : vector<128x64xf32>
    %c0_34 = arith.constant 0 : index
    %c0_35 = arith.constant 0 : index
    %36 = vector.load %arg5[%c0_34, %c0_35] : memref<1x64xf32, #tpu.memory_space<vmem>>, vector<1x64xf32>
    %37 = vector.broadcast %36 : vector<1x64xf32> to vector<128x64xf32>
    %38 = arith.addf %35, %37 : vector<128x64xf32>
    %c0_36 = arith.constant 0 : index
    %c0_37 = arith.constant 0 : index
    %c0_38 = arith.constant 0 : index
    %c0_39 = arith.constant 0 : index
    %39 = vector.load %arg6[%c0_36, %c0_37, %c0_38, %c0_39] : memref<1x1x128x64xf32, #tpu.memory_space<vmem>>, vector<1x1x128x64xf32>
    %40 = vector.shape_cast %39 : vector<1x1x128x64xf32> to vector<128x64xf32>
    %41 = vector.shape_cast %38 : vector<128x64xf32> to vector<1x1x128x64xf32>
    tpu.vector_store %arg6[%c0_36, %c0_37, %c0_38, %c0_39], %41 {strides = array<i32>} : memref<1x1x128x64xf32, #tpu.memory_space<vmem>>, vector<1x1x128x64xf32>,
    return
  }
  func.func @transform_0(%arg0: i32, %arg1: i32) -> (i32, i32, i32, i32) {
    %c0_i32 = arith.constant 0 : i32
    %c0_i32_0 = arith.constant 0 : i32
    %c0_i32_1 = arith.constant 0 : i32
    return %arg0, %arg1, %c0_i32, %c0_i32_0 : i32, i32, i32, i32
  }
  func.func @transform_1(%arg0: i32, %arg1: i32) -> (i32, i32, i32) {
    %c0_i32 = arith.constant 0 : i32
    %c0_i32_0 = arith.constant 0 : i32
    %c0_i32_1 = arith.constant 0 : i32
    %c0_i32_2 = arith.constant 0 : i32
    return %c0_i32, %c0_i32_0, %c0_i32_1 : i32, i32, i32
  }
  func.func @transform_2(%arg0: i32, %arg1: i32) -> (i32, i32) {
    %c0_i32 = arith.constant 0 : i32
    %c0_i32_0 = arith.constant 0 : i32
    %c0_i32_1 = arith.constant 0 : i32
    return %c0_i32, %c0_i32_0 : i32, i32
  }
  func.func @transform_3(%arg0: i32, %arg1: i32) -> (i32, i32) {
    %c0_i32 = arith.constant 0 : i32
    %c0_i32_0 = arith.constant 0 : i32
    %c0_i32_1 = arith.constant 0 : i32
    return %c0_i32, %c0_i32_0 : i32, i32
  }
  func.func @transform_4(%arg0: i32, %arg1: i32) -> (i32, i32, i32, i32) {
    %c0_i32 = arith.constant 0 : i32
    %c0_i32_0 = arith.constant 0 : i32
    %c0_i32_1 = arith.constant 0 : i32
    return %arg0, %arg1, %c0_i32, %c0_i32_0 : i32, i32, i32, i32
  }
}

</mosaic_0001>

<llo_original>
// kernel: _conv5x5_fused.1
$region0: #{_conv5x5_fused.1}
  #allocation0 [shape = 'u32[]', space=smem, size = 0x4, offset = 0x4, fixed_abs, tag = 'smem constant byte address 0x4 - core index']
  #allocation1 [shape = 'u32[144,128]{1,0:T(1,128)}', space=vmem, size = 0x12000, scoped, tag = 'internal scratch']
  %s0 = inlined_call_operand.vmem [shape: bf16[2,2,192,15], index: 0, kind: input, shape index: {}]
  %s1 = inlined_call_operand.vmem [shape: bf16[5,15,64], index: 1, kind: input, shape index: {}]
  %s2 = inlined_call_operand.vmem [shape: f32[1,64], index: 2, kind: input, shape index: {}]
  %s3 = inlined_call_operand.vmem [shape: f32[1,64], index: 3, kind: input, shape index: {}]
  %s4 = inlined_call_operand.vmem [shape: f32[2,2,128,64], index: 4, kind: output, shape index: {}]
  %s5 = sld [smem:[#allocation0]]
  $region49: #{_conv5x5_fused.1} parent=0
    _
  %s7 = ssub.s32 1, %s5
  %s8 = scalar_select 0, %s7, %s5
  loop: start=0, step=1, limit=6
  $region2: #{_conv5x5_fused.1} parent=0 // loop_pre_header
    _
  $region3: #{_conv5x5_fused.1} parent=0 // loop_header
    %s10 = sphi 0, %s14
    %p11 = scmp.ge.s32.totalorder %s10, 6
    %s17 = sphi 0, %s29
    %s18 = sphi 0, %s25
    %s19 = sphi 0, %s17
    %s20 = sphi 0, %s18
    %s21 = sphi 0, %s19
    %s22 = sphi 0, %s20
    %s34 = sphi 0, %s36
    %s37 = sphi 0, %s34
    %s38 = sphi 0, %s37
    %s54 = sphi 0, %s38
    %s58 = sphi 0, %s58
    %s60 = sphi 0, %s58
    %s61 = sphi 0, %s60
    %s75 = sphi 0, %s61
    %s79 = sphi 0, %s79
    %s81 = sphi 0, %s79
    %s82 = sphi 0, %s81
    %s96 = sphi 0, %s82
    %s100 = sphi 0, %s100
    %s102 = sphi 0, %s100
    %s103 = sphi 0, %s102
    %s117 = sphi 0, %s103
    %s125 = sphi 0, %s127
    %s128 = sphi 0, %s125
    %s129 = sphi 0, %s128
    %s145 = sphi 0, %s129
  $region4: #{_conv5x5_fused.1} parent=0 // loop_header_branch
    %13 = sbr.rel (%p11) target = $region8
  $region5: #{_conv5x5_fused.1} parent=0 // loop_body
    %s15 = ssub.s32 %s10, 1
    %s16 = ssub.s32 %s10, 2
    %s23 = sadd.s32 1, %s18
    %p24 = scmp.ge.s32.totalorder %s23, 2
    %s25 = scalar_select %p24, 0, %s23
    %s26 = sadd.s32 1, %s17
    %s27 = scalar_select %p24, %s26, %s17
    %p28 = scmp.ge.s32.totalorder %s27, 2
    %s29 = scalar_select %p28, 0, %s27
    %s30 = ssub.s32 %s17, %s29
    %s31 = ssub.s32 %s18, %s25
    %s32 = sor.u32 %s30, %s31
    %p33 = scmp.eq.s32.totalorder %s32, 0
    %s35 = sadd.s32 %s34, 1
    %s36 = scalar_select %p33, %s34, %s35
    %p39 = pneg %p33
    %p40 = scmp.eq.s32.totalorder %s10, 3
    %p41 = por %p39, %p40
    %p42 = scmp.ne.s32.totalorder %s34, %s37
    %p43 = scmp.eq.s32.totalorder %s10, 0
    %p44 = por %p42, %p43
    %p45 = scmp.ne.s32.totalorder %s34, %s37
    %p46 = scmp.eq.s32.totalorder %s15, 3
    %p47 = por %p45, %p46
    %p48 = scmp.ne.s32.totalorder %s37, %s38
    %p49 = scmp.eq.s32.totalorder %s15, 0
    %p50 = por %p48, %p49
    %p51 = scmp.ne.s32.totalorder %s37, %s38
    %p52 = scmp.eq.s32.totalorder %s16, 3
    %p53 = por %p51, %p52
    %p55 = scmp.ne.s32.totalorder %s38, %s54
    %p56 = scmp.eq.s32.totalorder %s16, 0
    %p57 = por %p55, %p56
    %s59 = sadd.s32 %s58, 1
    %p62 = scmp.eq.s32.totalorder %s10, 3
    %p63 = scmp.ne.s32.totalorder %s58, %s60
    %p64 = scmp.eq.s32.totalorder %s10, 0
    %p65 = por %p63, %p64
    %p66 = scmp.ne.s32.totalorder %s58, %s60
    %p67 = scmp.eq.s32.totalorder %s15, 3
    %p68 = por %p66, %p67
    %p69 = scmp.ne.s32.totalorder %s60, %s61
    %p70 = scmp.eq.s32.totalorder %s15, 0
    %p71 = por %p69, %p70
    %p72 = scmp.ne.s32.totalorder %s60, %s61
    %p73 = scmp.eq.s32.totalorder %s16, 3
    %p74 = por %p72, %p73
    %p76 = scmp.ne.s32.totalorder %s61, %s75
    %p77 = scmp.eq.s32.totalorder %s16, 0
    %p78 = por %p76, %p77
    %s80 = sadd.s32 %s79, 1
    %p83 = scmp.eq.s32.totalorder %s10, 3
    %p84 = scmp.ne.s32.totalorder %s79, %s81
    %p85 = scmp.eq.s32.totalorder %s10, 0
    %p86 = por %p84, %p85
    %p87 = scmp.ne.s32.totalorder %s79, %s81
    %p88 = scmp.eq.s32.totalorder %s15, 3
    %p89 = por %p87, %p88
    %p90 = scmp.ne.s32.totalorder %s81, %s82
    %p91 = scmp.eq.s32.totalorder %s15, 0
    %p92 = por %p90, %p91
    %p93 = scmp.ne.s32.totalorder %s81, %s82
    %p94 = scmp.eq.s32.totalorder %s16, 3
    %p95 = por %p93, %p94
    %p97 = scmp.ne.s32.totalorder %s82, %s96
    %p98 = scmp.eq.s32.totalorder %s16, 0
    %p99 = por %p97, %p98
    %s101 = sadd.s32 %s100, 1
    %p104 = scmp.eq.s32.totalorder %s10, 3
    %p105 = scmp.ne.s32.totalorder %s100, %s102
    %p106 = scmp.eq.s32.totalorder %s10, 0
    %p107 = por %p105, %p106
    %p108 = scmp.ne.s32.totalorder %s100, %s102
    %p109 = scmp.eq.s32.totalorder %s15, 3
    %p110 = por %p108, %p109
    %p111 = scmp.ne.s32.totalorder %s102, %s103
    %p112 = scmp.eq.s32.totalorder %s15, 0
    %p113 = por %p111, %p112
    %p114 = scmp.ne.s32.totalorder %s102, %s103
    %p115 = scmp.eq.s32.totalorder %s16, 3
    %p116 = por %p114, %p115
    %p118 = scmp.ne.s32.totalorder %s103, %s117
    %p119 = scmp.eq.s32.totalorder %s16, 0
    %p120 = por %p118, %p119
    %s121 = ssub.s32 %s17, %s29
    %s122 = ssub.s32 %s18, %s25
    %s123 = sor.u32 %s121, %s122
    %p124 = scmp.eq.s32.totalorder %s123, 0
    %s126 = sadd.s32 %s125, 1
    %s127 = scalar_select %p124, %s125, %s126
    %p130 = pneg %p124
    %p131 = scmp.eq.s32.totalorder %s10, 3
    %p132 = por %p130, %p131
    %p133 = scmp.ne.s32.totalorder %s125, %s128
    %p134 = scmp.eq.s32.totalorder %s10, 0
    %p135 = por %p133, %p134
    %p136 = scmp.ne.s32.totalorder %s125, %s128
    %p137 = scmp.eq.s32.totalorder %s15, 3
    %p138 = por %p136, %p137
    %p139 = scmp.ne.s32.totalorder %s128, %s129
    %p140 = scmp.eq.s32.totalorder %s15, 0
    %p141 = por %p139, %p140
    %p142 = scmp.ne.s32.totalorder %s128, %s129
    %p143 = scmp.eq.s32.totalorder %s16, 3
    %p144 = por %p142, %p143
    %p146 = scmp.ne.s32.totalorder %s129, %s145
    %p147 = scmp.eq.s32.totalorder %s16, 0
    %p148 = por %p146, %p147
    %p149 = scmp.le.s32.totalorder 1, %s10
    %p150 = scmp.lt.s32.totalorder %s10, 5
    %p151 = pnand %p149, %p150
    %p152 = pneg %p151
    // Predicated region
    $region9: #{_conv5x5_fused.1} parent=5 // pred_check
      _
    $region10: #{_conv5x5_fused.1} parent=5 // pred_check_branch
      %154 = sbr.rel (%p151) target = $region12
    $region11: #{_conv5x5_fused.1} parent=5 // pred_region
      %s155 = ssub.s32 %s10, 1
      // Predicated region
      $region13: #{_conv5x5_fused.1} parent=11 // pred_check
        %p156 = pneg %p71
      $region14: #{_conv5x5_fused.1} parent=11 // pred_check_branch
        %158 = sbr.rel (%p156) target = $region16
      $region15: #{_conv5x5_fused.1} parent=11 // pred_region
        _
      $region16: #{_conv5x5_fused.1} parent=11 // pred_fallthru
        _
      // Predicated region
      $region17: #{_conv5x5_fused.1} parent=11 // pred_check
        %p159 = pneg %p92
      $region18: #{_conv5x5_fused.1} parent=11 // pred_check_branch
        %161 = sbr.rel (%p159) target = $region20
      $region19: #{_conv5x5_fused.1} parent=11 // pred_region
        _
      $region20: #{_conv5x5_fused.1} parent=11 // pred_fallthru
        _
      // Predicated region
      $region21: #{_conv5x5_fused.1} parent=11 // pred_check
        %p162 = pneg %p113
      $region22: #{_conv5x5_fused.1} parent=11 // pred_check_branch
        %164 = sbr.rel (%p162) target = $region24
      $region23: #{_conv5x5_fused.1} parent=11 // pred_region
        _
      $region24: #{_conv5x5_fused.1} parent=11 // pred_fallthru
        _
    $region12: #{_conv5x5_fused.1} parent=5 // pred_fallthru
      _
    %p165 = scmp.lt.s32.totalorder %s10, 4
    // Predicated region
    $region25: #{_conv5x5_fused.1} parent=5 // pred_check
      %p166 = pneg %p165
    $region26: #{_conv5x5_fused.1} parent=5 // pred_check_branch
      %168 = sbr.rel (%p166) target = $region28
    $region27: #{_conv5x5_fused.1} parent=5 // pred_region
      // Predicated region
      $region29: #{_conv5x5_fused.1} parent=27 // pred_check
        %p169 = pneg %p44
      $region30: #{_conv5x5_fused.1} parent=27 // pred_check_branch
        %171 = sbr.rel (%p169) target = $region32
      $region31: #{_conv5x5_fused.1} parent=27 // pred_region
        %p172 = scmp.lt.s32.totalorder %s17, 1
        %s173 = scalar_select %p172, %s17, 1
        %p174 = scmp.lt.s32.totalorder %s18, 1
        %s175 = scalar_select %p174, %s18, 1
        %s176 = smul.addr %s175, 24
        %s177 = smul.addr %s173, 48
        %s178 = sadd.s32 %s176, %s177
        %s179 = smul.addr %s178, 4
        %s180 = scalar_lea.vmem %s0, %s179
      $region32: #{_conv5x5_fused.1} parent=27 // pred_fallthru
        _
    $region28: #{_conv5x5_fused.1} parent=5 // pred_fallthru
      _
    %p181 = scmp.le.s32.totalorder 1, %s10
    %p182 = scmp.lt.s32.totalorder %s10, 5
    %p183 = pnand %p181, %p182
    %p184 = pneg %p183
    // Predicated region
    $region33: #{_conv5x5_fused.1} parent=5 // pred_check
      _
    $region34: #{_conv5x5_fused.1} parent=5 // pred_check_branch
      %186 = sbr.rel (%p183) target = $region36
    $region35: #{_conv5x5_fused.1} parent=5 // pred_region
      %s187 = ssub.s32 %s10, 1
      %p188 = scmp.lt.s32.totalorder %s19, 1
      %s189 = scalar_select %p188, %s19, 1
      %p190 = scmp.lt.s32.totalorder %s20, 1
      %s191 = scalar_select %p190, %s20, 1
      %s192 = smul.addr %s191, 24
      %s193 = smul.addr %s189, 48
      %s194 = sadd.s32 %s192, %s193
      %s195 = smul.addr %s194, 4
      %s196 = scalar_lea.vmem %s0, %s195
      %p197 = pneg %p50
      %p198 = pneg %p47
      %p199 = pneg %p71
      %p200 = pneg %p68
      %p201 = pneg %p92
      %p202 = pneg %p89
      %p203 = pneg %p113
      %p204 = pneg %p110
      %p205 = pneg %p141
      %p206 = pneg %p138
      %p207 = scmp.lt.s32.totalorder %s19, 1
      %s208 = scalar_select %p207, %s19, 1
      %p209 = scmp.lt.s32.totalorder %s20, 1
      %s210 = scalar_select %p209, %s20, 1
      %s211 = smul.addr %s210, 16
      %s212 = smul.addr %s208, 32
      %s213 = sadd.s32 %s211, %s212
      %s214 = smul.addr %s213, 8
      %s215 = scalar_lea.vmem %s4, %s214
      %p216 = scmp.lt.s32.totalorder %s19, 1
      %s217 = scalar_select %p216, %s19, 1
      %p218 = scmp.lt.s32.totalorder %s20, 1
      %s219 = scalar_select %p218, %s20, 1
      %s220 = smul.addr %s219, 24
      %s221 = smul.addr %s217, 48
      %s222 = sadd.s32 %s220, %s221
      %s223 = smul.addr %s222, 4
      %s224 = scalar_lea.vmem %s0, %s223
      %p225 = scmp.lt.s32.totalorder %s19, 1
      %s226 = scalar_select %p225, %s19, 1
      %p227 = scmp.lt.s32.totalorder %s20, 1
      %s228 = scalar_select %p227, %s20, 1
      %s229 = smul.addr %s228, 16
      %s230 = smul.addr %s226, 32
      %s231 = sadd.s32 %s229, %s230
      %s232 = smul.addr %s231, 8
      %s233 = scalar_lea.vmem %s4, %s232
      %v235 = vld [vmem:[%s224] sm:$0xf]
      %v236 = vld [vmem:[%s224 + $0x4] sm:$0xf]
      %v237 = vld [vmem:[%s224 + $0x8] sm:$0xf]
      %v238 = vld [vmem:[%s224 + $0xc] sm:$0xf]
      %v239 = vld [vmem:[%s224 + $0x10] sm:$0xf]
      %v240 = vld [vmem:[%s224 + $0x14] sm:$0xf]
      %v241 = vld [vmem:[%s224 + $0x18] sm:$0xf]
      %v242 = vld [vmem:[%s224 + $0x1c] sm:$0xf]
      %v243 = vld [vmem:[%s224 + $0x20] sm:$0xf]
      %v244 = vld [vmem:[%s224 + $0x24] sm:$0xf]
      %v245 = vld [vmem:[%s224 + $0x28] sm:$0xf]
      %v246 = vld [vmem:[%s224 + $0x2c] sm:$0xf]
      %v247 = vld [vmem:[%s224 + $0x30] sm:$0xf]
      %v248 = vld [vmem:[%s224 + $0x34] sm:$0xf]
      %v249 = vld [vmem:[%s224 + $0x38] sm:$0xf]
      %v250 = vld [vmem:[%s224 + $0x3c] sm:$0xf]
      %v251 = vld [vmem:[%s1] sm:$0xf]
      %v252 = vld [vmem:[%s1 + $0x4] sm:$0xf]
      %v253 = vld [vmem:[%s224 + $0x40] sm:$0xf]
      %v254 = vld [vmem:[%s224 + $0x44] sm:$0xf]
      %s255 = scalar_lea.vmem %s1, 8
      %v256 = vld [vmem:[%s255] sm:$0xf]
      %v257 = vld [vmem:[%s255 + $0x4] sm:$0xf]
      %v258 = vld [vmem:[%s224 + $0x48] sm:$0xf]
      %v259 = vld [vmem:[%s224 + $0x4c] sm:$0xf]
      %s260 = scalar_lea.vmem %s1, 16
      %v261 = vld [vmem:[%s260] sm:$0xf]
      %v262 = vld [vmem:[%s260 + $0x4] sm:$0xf]
      %v279 = vunpack.c.l.b16 %v239
      %v280 = vunpack.c.l.b16 %v240
      %v281 = vunpack.c.l.b16 %v241
      %v282 = vunpack.c.l.b16 %v242
      %v283 = vunpack.c.l.b16 %v243
      %v284 = vunpack.c.l.b16 %v244
      %v285 = vunpack.c.l.b16 %v245
      %v286 = vunpack.c.l.b16 %v246
      %v287 = vunpack.c.l.b16 %v247
      %v288 = vunpack.c.l.b16 %v248
      %v289 = vunpack.c.l.b16 %v249
      %v290 = vunpack.c.l.b16 %v250
      %v291 = vunpack.c.l.b16 %v253
      %v292 = vunpack.c.l.b16 %v254
      %v293 = vunpack.c.l.b16 %v258
      %v294 = vunpack.c.l.b16 %v259
      %v295 = vpack.c.b16 %v280, %v279
      %v296 = vpack.c.b16 %v282, %v281
      %v297 = vpack.c.b16 %v284, %v283
      %v298 = vpack.c.b16 %v286, %v285
      %v299 = vpack.c.b16 %v288, %v287
      %v300 = vpack.c.b16 %v290, %v289
      %v301 = vpack.c.b16 %v292, %v291
      %v302 = vpack.c.b16 %v294, %v293
      %v305 = vunpack.c.l.b16 %v261
      %v306 = vunpack.c.l.b16 %v262
      %v307 = vpack.c.b16 %v306, %v305
      %vm308 = vcmask 121856
      %v310 = vsel %vm308, %v295, 0
      %v313 = vsel %vm308, %v296, 0
      %v316 = vsel %vm308, %v297, 0
      %v319 = vsel %vm308, %v298, 0
      %v322 = vsel %vm308, %v299, 0
      %v325 = vsel %vm308, %v300, 0
      %v328 = vsel %vm308, %v301, 0
      %v331 = vsel %vm308, %v302, 0
      %vm333 = vcmask 1046528
      %vm334 = vcmask 1047552
      %v335 = vsel %vm333, 4294967295, 65535
      %v336 = vsel %vm334, %v335, 0
      %v338 = vand.u32 %v307, %v336
      %340 = vmatprep.subr.bf16.mxu0 0
      %341 = vmatpush1.bf16.msra.mxu0 0
      %342 = vmatprep.subr.bf16.mxu0 0
      %343 = vmatpush1.bf16.msra.mxu0 0
      %344 = vmatprep.subr.bf16.mxu0 0
      %345 = vmatpush1.bf16.msra.mxu0 0
      %346 = vmatprep.subr.bf16.mxu0 0
      %347 = vmatpush1.bf16.msra.mxu0 0
      %348 = vmatprep.subr.bf16.mxu0 0
      %349 = vmatpush1.bf16.msra.mxu0 0
      %350 = vmatprep.subr.bf16.mxu0 0
      %351 = vmatpush1.bf16.msra.mxu0 0
      %352 = vmatprep.subr.bf16.mxu0 0
      %353 = vmatpush1.bf16.msra.mxu0 0
      %354 = vmatprep.subr.bf16.mxu0 0
      %355 = vmatpush1.bf16.msra.mxu0 %v338
      %356 = vmatprep.subr.bf16.mxu0 0
      %357 = vmatpush2.bf16.msra.mxu0 0
      %358 = vmatprep.subr.bf16.mxu0 0
      %359 = vmatpush2.bf16.msra.mxu0 0
      %360 = vmatprep.subr.bf16.mxu0 0
      %361 = vmatpush2.bf16.msra.mxu0 0
      %362 = vmatprep.subr.bf16.mxu0 0
      %363 = vmatpush2.bf16.msra.mxu0 0
      %364 = vmatprep.subr.bf16.mxu0 0
      %365 = vmatpush2.bf16.msra.mxu0 0
      %366 = vmatprep.subr.bf16.mxu0 0
      %367 = vmatpush2.bf16.msra.mxu0 0
      %368 = vmatprep.subr.bf16.mxu0 0
      %369 = vmatpush2.bf16.msra.mxu0 0
      %370 = vmatprep.subr.bf16.mxu0 0
      %371 = vmatpush2.bf16.msra.mxu0 0
      %372 = vmatprep.mubr.bf16.mxu0 0
      %373 = vmatmul.mubr.bf16.gmra.mxu0 %v310
      %v374 = vpop.f32.mrf.mxu0
      %v375 = vadd.f32 0.0, %v374
      %v376 = vpop.f32.mrf.mxu0
      %v377 = vpop.f32.mrf.mxu0
      %v378 = vadd.f32 0.0, %v377
      %v379 = vpop.f32.mrf.mxu0
      %380 = vmatprep.mubr.bf16.mxu0 0
      %381 = vmatmul.mubr.bf16.gmra.mxu0 %v313
      %v382 = vpop.f32.mrf.mxu0
      %v383 = vadd.f32 0.0, %v382
      %v384 = vpop.f32.mrf.mxu0
      %v385 = vpop.f32.mrf.mxu0
      %v386 = vadd.f32 0.0, %v385
      %v387 = vpop.f32.mrf.mxu0
      %388 = vmatprep.mubr.bf16.mxu0 0
      %389 = vmatmul.mubr.bf16.gmra.mxu0 %v316
      %v390 = vpop.f32.mrf.mxu0
      %v391 = vadd.f32 0.0, %v390
      %v392 = vpop.f32.mrf.mxu0
      %v393 = vpop.f32.mrf.mxu0
      %v394 = vadd.f32 0.0, %v393
      %v395 = vpop.f32.mrf.mxu0
      %396 = vmatprep.mubr.bf16.mxu0 0
      %397 = vmatmul.mubr.bf16.gmra.mxu0 %v319
      %v398 = vpop.f32.mrf.mxu0
      %v399 = vadd.f32 0.0, %v398
      %v400 = vpop.f32.mrf.mxu0
      %v401 = vpop.f32.mrf.mxu0
      %v402 = vadd.f32 0.0, %v401
      %v403 = vpop.f32.mrf.mxu0
      %404 = vmatprep.mubr.bf16.mxu0 0
      %405 = vmatmul.mubr.bf16.gmra.mxu0 %v322
      %v406 = vpop.f32.mrf.mxu0
      %v407 = vadd.f32 0.0, %v406
      %v408 = vpop.f32.mrf.mxu0
      %v409 = vpop.f32.mrf.mxu0
      %v410 = vadd.f32 0.0, %v409
      %v411 = vpop.f32.mrf.mxu0
      %412 = vmatprep.mubr.bf16.mxu0 0
      %413 = vmatmul.mubr.bf16.gmra.mxu0 %v325
      %v414 = vpop.f32.mrf.mxu0
      %v415 = vadd.f32 0.0, %v414
      %v416 = vpop.f32.mrf.mxu0
      %v417 = vpop.f32.mrf.mxu0
      %v418 = vadd.f32 0.0, %v417
      %v419 = vpop.f32.mrf.mxu0
      %420 = vmatprep.mubr.bf16.mxu0 0
      %421 = vmatmul.mubr.bf16.gmra.mxu0 %v328
      %v422 = vpop.f32.mrf.mxu0
      %v423 = vadd.f32 0.0, %v422
      %v424 = vpop.f32.mrf.mxu0
      %v425 = vpop.f32.mrf.mxu0
      %v426 = vadd.f32 0.0, %v425
      %v427 = vpop.f32.mrf.mxu0
      %428 = vmatprep.mubr.bf16.mxu0 0
      %429 = vmatmul.mubr.bf16.gmra.mxu0 %v331
      %v430 = vpop.f32.mrf.mxu0
      %v431 = vadd.f32 0.0, %v430
      %v432 = vpop.f32.mrf.mxu0
      %v433 = vpop.f32.mrf.mxu0
      %v434 = vadd.f32 0.0, %v433
      %v435 = vpop.f32.mrf.mxu0
      %436 = vdwg.mxu0
      %v441 = vunpack.c.l.b16 %v235
      %v442 = vunpack.c.l.b16 %v236
      %v443 = vunpack.c.l.b16 %v237
      %v444 = vunpack.c.l.b16 %v238
      %v445 = vpack.c.b16 %v442, %v441
      %v446 = vpack.c.b16 %v444, %v443
      %v449 = vunpack.c.l.b16 %v251
      %v450 = vunpack.c.l.b16 %v252
      %v451 = vpack.c.b16 %v450, %v449
      %v453 = vsel %vm308, %v445, 0
      %v456 = vsel %vm308, %v446, 0
      %v459 = vand.u32 %v451, %v336
      %461 = vmatprep.subr.bf16.mxu0 0
      %462 = vmatpush1.bf16.msra.mxu0 0
      %463 = vmatprep.subr.bf16.mxu0 0
      %464 = vmatpush1.bf16.msra.mxu0 0
      %465 = vmatprep.subr.bf16.mxu0 0
      %466 = vmatpush1.bf16.msra.mxu0 0
      %467 = vmatprep.subr.bf16.mxu0 0
      %468 = vmatpush1.bf16.msra.mxu0 0
      %469 = vmatprep.subr.bf16.mxu0 0
      %470 = vmatpush1.bf16.msra.mxu0 0
      %471 = vmatprep.subr.bf16.mxu0 0
      %472 = vmatpush1.bf16.msra.mxu0 0
      %473 = vmatprep.subr.bf16.mxu0 0
      %474 = vmatpush1.bf16.msra.mxu0 0
      %475 = vmatprep.subr.bf16.mxu0 0
      %476 = vmatpush1.bf16.msra.mxu0 %v459
      %477 = vmatprep.subr.bf16.mxu0 0
      %478 = vmatpush2.bf16.msra.mxu0 0
      %479 = vmatprep.subr.bf16.mxu0 0
      %480 = vmatpush2.bf16.msra.mxu0 0
      %481 = vmatprep.subr.bf16.mxu0 0
      %482 = vmatpush2.bf16.msra.mxu0 0
      %483 = vmatprep.subr.bf16.mxu0 0
      %484 = vmatpush2.bf16.msra.mxu0 0
      %485 = vmatprep.subr.bf16.mxu0 0
      %486 = vmatpush2.bf16.msra.mxu0 0
      %487 = vmatprep.subr.bf16.mxu0 0
      %488 = vmatpush2.bf16.msra.mxu0 0
      %489 = vmatprep.subr.bf16.mxu0 0
      %490 = vmatpush2.bf16.msra.mxu0 0
      %491 = vmatprep.subr.bf16.mxu0 0
      %492 = vmatpush2.bf16.msra.mxu0 0
      %493 = vmatprep.mubr.bf16.mxu0 0
      %494 = vmatmul.mubr.bf16.gmra.mxu0 %v453
      %v495 = vpop.f32.mrf.mxu0
      %v496 = vadd.f32 %v375, %v495
      %v497 = vpop.f32.mrf.mxu0
      %v498 = vpop.f32.mrf.mxu0
      %v499 = vadd.f32 %v378, %v498
      %v500 = vpop.f32.mrf.mxu0
      %501 = vmatprep.mubr.bf16.mxu0 0
      %502 = vmatmul.mubr.bf16.gmra.mxu0 %v456
      %v503 = vpop.f32.mrf.mxu0
      %v504 = vadd.f32 %v383, %v503
      %v505 = vpop.f32.mrf.mxu0
      %v506 = vpop.f32.mrf.mxu0
      %v507 = vadd.f32 %v386, %v506
      %v508 = vpop.f32.mrf.mxu0
      %509 = vmatprep.mubr.bf16.mxu0 0
      %510 = vmatmul.mubr.bf16.gmra.mxu0 %v310
      %v511 = vpop.f32.mrf.mxu0
      %v512 = vadd.f32 %v391, %v511
      %v513 = vpop.f32.mrf.mxu0
      %v514 = vpop.f32.mrf.mxu0
      %v515 = vadd.f32 %v394, %v514
      %v516 = vpop.f32.mrf.mxu0
      %517 = vmatprep.mubr.bf16.mxu0 0
      %518 = vmatmul.mubr.bf16.gmra.mxu0 %v313
      %v519 = vpop.f32.mrf.mxu0
      %v520 = vadd.f32 %v399, %v519
      %v521 = vpop.f32.mrf.mxu0
      %v522 = vpop.f32.mrf.mxu0
      %v523 = vadd.f32 %v402, %v522
      %v524 = vpop.f32.mrf.mxu0
      %525 = vmatprep.mubr.bf16.mxu0 0
      %526 = vmatmul.mubr.bf16.gmra.mxu0 %v316
      %v527 = vpop.f32.mrf.mxu0
      %v528 = vadd.f32 %v407, %v527
      %v529 = vpop.f32.mrf.mxu0
      %v530 = vpop.f32.mrf.mxu0
      %v531 = vadd.f32 %v410, %v530
      %v532 = vpop.f32.mrf.mxu0
      %533 = vmatprep.mubr.bf16.mxu0 0
      %534 = vmatmul.mubr.bf16.gmra.mxu0 %v319
      %v535 = vpop.f32.mrf.mxu0
      %v536 = vadd.f32 %v415, %v535
      %v537 = vpop.f32.mrf.mxu0
      %v538 = vpop.f32.mrf.mxu0
      %v539 = vadd.f32 %v418, %v538
      %v540 = vpop.f32.mrf.mxu0
      %541 = vmatprep.mubr.bf16.mxu0 0
      %542 = vmatmul.mubr.bf16.gmra.mxu0 %v322
      %v543 = vpop.f32.mrf.mxu0
      %v544 = vadd.f32 %v423, %v543
      %v545 = vpop.f32.mrf.mxu0
      %v546 = vpop.f32.mrf.mxu0
      %v547 = vadd.f32 %v426, %v546
      %v548 = vpop.f32.mrf.mxu0
      %549 = vmatprep.mubr.bf16.mxu0 0
      %550 = vmatmul.mubr.bf16.gmra.mxu0 %v325
      %v551 = vpop.f32.mrf.mxu0
      %v552 = vadd.f32 %v431, %v551
      %v553 = vpop.f32.mrf.mxu0
      %v554 = vpop.f32.mrf.mxu0
      %v555 = vadd.f32 %v434, %v554
      %v556 = vpop.f32.mrf.mxu0
      %557 = vdwg.mxu0
      %v558 = vld [vmem:[%s224 + $0x18] sm:$0xf]
      %v559 = vld [vmem:[%s224 + $0x1c] sm:$0xf]
      %v560 = vld [vmem:[%s224 + $0x20] sm:$0xf]
      %v561 = vld [vmem:[%s224 + $0x24] sm:$0xf]
      %v562 = vld [vmem:[%s224 + $0x28] sm:$0xf]
      %v563 = vld [vmem:[%s224 + $0x2c] sm:$0xf]
      %v564 = vld [vmem:[%s224 + $0x30] sm:$0xf]
      %v565 = vld [vmem:[%s224 + $0x34] sm:$0xf]
      %v566 = vld [vmem:[%s224 + $0x38] sm:$0xf]
      %v567 = vld [vmem:[%s224 + $0x3c] sm:$0xf]
      %v568 = vld [vmem:[%s224 + $0x40] sm:$0xf]
      %v569 = vld [vmem:[%s224 + $0x44] sm:$0xf]
      %v570 = vld [vmem:[%s224 + $0x48] sm:$0xf]
      %v571 = vld [vmem:[%s224 + $0x4c] sm:$0xf]
      %v572 = vld [vmem:[%s224 + $0x50] sm:$0xf]
      %v573 = vld [vmem:[%s224 + $0x54] sm:$0xf]
      %s574 = scalar_lea.vmem %s1, 24
      %v575 = vld [vmem:[%s574] sm:$0xf]
      %v576 = vld [vmem:[%s574 + $0x4] sm:$0xf]
      %v593 = vunpack.c.l.b16 %v558
      %v594 = vunpack.c.l.b16 %v559
      %v595 = vunpack.c.l.b16 %v560
      %v596 = vunpack.c.l.b16 %v561
      %v597 = vunpack.c.l.b16 %v562
      %v598 = vunpack.c.l.b16 %v563
      %v599 = vunpack.c.l.b16 %v564
      %v600 = vunpack.c.l.b16 %v565
      %v601 = vunpack.c.l.b16 %v566
      %v602 = vunpack.c.l.b16 %v567
      %v603 = vunpack.c.l.b16 %v568
      %v604 = vunpack.c.l.b16 %v569
      %v605 = vunpack.c.l.b16 %v570
      %v606 = vunpack.c.l.b16 %v571
      %v607 = vunpack.c.l.b16 %v572
      %v608 = vunpack.c.l.b16 %v573
      %v609 = vpack.c.b16 %v594, %v593
      %v610 = vpack.c.b16 %v596, %v595
      %v611 = vpack.c.b16 %v598, %v597
      %v612 = vpack.c.b16 %v600, %v599
      %v613 = vpack.c.b16 %v602, %v601
      %v614 = vpack.c.b16 %v604, %v603
      %v615 = vpack.c.b16 %v606, %v605
      %v616 = vpack.c.b16 %v608, %v607
      %v619 = vunpack.c.l.b16 %v575
      %v620 = vunpack.c.l.b16 %v576
      %v621 = vpack.c.b16 %v620, %v619
      %v623 = vsel %vm308, %v609, 0
      %v626 = vsel %vm308, %v610, 0
      %v629 = vsel %vm308, %v611, 0
      %v632 = vsel %vm308, %v612, 0
      %v635 = vsel %vm308, %v613, 0
      %v638 = vsel %vm308, %v614, 0
      %v641 = vsel %vm308, %v615, 0
      %v644 = vsel %vm308, %v616, 0
      %v647 = vand.u32 %v621, %v336
      %649 = vmatprep.subr.bf16.mxu0 0
      %650 = vmatpush1.bf16.msra.mxu0 0
      %651 = vmatprep.subr.bf16.mxu0 0
      %652 = vmatpush1.bf16.msra.mxu0 0
      %653 = vmatprep.subr.bf16.mxu0 0
      %654 = vmatpush1.bf16.msra.mxu0 0
      %655 = vmatprep.subr.bf16.mxu0 0
      %656 = vmatpush1.bf16.msra.mxu0 0
      %657 = vmatprep.subr.bf16.mxu0 0
      %658 = vmatpush1.bf16.msra.mxu0 0
      %659 = vmatprep.subr.bf16.mxu0 0
      %660 = vmatpush1.bf16.msra.mxu0 0
      %661 = vmatprep.subr.bf16.mxu0 0
      %662 = vmatpush1.bf16.msra.mxu0 0
      %663 = vmatprep.subr.bf16.mxu0 0
      %664 = vmatpush1.bf16.msra.mxu0 %v647
      %665 = vmatprep.subr.bf16.mxu0 0
      %666 = vmatpush2.bf16.msra.mxu0 0
      %667 = vmatprep.subr.bf16.mxu0 0
      %668 = vmatpush2.bf16.msra.mxu0 0
      %669 = vmatprep.subr.bf16.mxu0 0
      %670 = vmatpush2.bf16.msra.mxu0 0
      %671 = vmatprep.subr.bf16.mxu0 0
      %672 = vmatpush2.bf16.msra.mxu0 0
      %673 = vmatprep.subr.bf16.mxu0 0
      %674 = vmatpush2.bf16.msra.mxu0 0
      %675 = vmatprep.subr.bf16.mxu0 0
      %676 = vmatpush2.bf16.msra.mxu0 0
      %677 = vmatprep.subr.bf16.mxu0 0
      %678 = vmatpush2.bf16.msra.mxu0 0
      %679 = vmatprep.subr.bf16.mxu0 0
      %680 = vmatpush2.bf16.msra.mxu0 0
      %681 = vmatprep.mubr.bf16.mxu0 0
      %682 = vmatmul.mubr.bf16.gmra.mxu0 %v623
      %v683 = vpop.f32.mrf.mxu0
      %v684 = vadd.f32 0.0, %v683
      %v685 = vpop.f32.mrf.mxu0
      %v686 = vpop.f32.mrf.mxu0
      %v687 = vadd.f32 0.0, %v686
      %v688 = vpop.f32.mrf.mxu0
      %689 = vmatprep.mubr.bf16.mxu0 0
      %690 = vmatmul.mubr.bf16.gmra.mxu0 %v626
      %v691 = vpop.f32.mrf.mxu0
      %v692 = vadd.f32 0.0, %v691
      %v693 = vpop.f32.mrf.mxu0
      %v694 = vpop.f32.mrf.mxu0
      %v695 = vadd.f32 0.0, %v694
      %v696 = vpop.f32.mrf.mxu0
      %697 = vmatprep.mubr.bf16.mxu0 0
      %698 = vmatmul.mubr.bf16.gmra.mxu0 %v629
      %v699 = vpop.f32.mrf.mxu0
      %v700 = vadd.f32 0.0, %v699
      %v701 = vpop.f32.mrf.mxu0
      %v702 = vpop.f32.mrf.mxu0
      %v703 = vadd.f32 0.0, %v702
      %v704 = vpop.f32.mrf.mxu0
      %705 = vmatprep.mubr.bf16.mxu0 0
      %706 = vmatmul.mubr.bf16.gmra.mxu0 %v632
      %v707 = vpop.f32.mrf.mxu0
      %v708 = vadd.f32 0.0, %v707
      %v709 = vpop.f32.mrf.mxu0
      %v710 = vpop.f32.mrf.mxu0
      %v711 = vadd.f32 0.0, %v710
      %v712 = vpop.f32.mrf.mxu0
      %713 = vmatprep.mubr.bf16.mxu0 0
      %714 = vmatmul.mubr.bf16.gmra.mxu0 %v635
      %v715 = vpop.f32.mrf.mxu0
      %v716 = vadd.f32 0.0, %v715
      %v717 = vpop.f32.mrf.mxu0
      %v718 = vpop.f32.mrf.mxu0
      %v719 = vadd.f32 0.0, %v718
      %v720 = vpop.f32.mrf.mxu0
      %721 = vmatprep.mubr.bf16.mxu0 0
      %722 = vmatmul.mubr.bf16.gmra.mxu0 %v638
      %v723 = vpop.f32.mrf.mxu0
      %v724 = vadd.f32 0.0, %v723
      %v725 = vpop.f32.mrf.mxu0
      %v726 = vpop.f32.mrf.mxu0
      %v727 = vadd.f32 0.0, %v726
      %v728 = vpop.f32.mrf.mxu0
      %729 = vmatprep.mubr.bf16.mxu0 0
      %730 = vmatmul.mubr.bf16.gmra.mxu0 %v641
      %v731 = vpop.f32.mrf.mxu0
      %v732 = vadd.f32 0.0, %v731
      %v733 = vpop.f32.mrf.mxu0
      %v734 = vpop.f32.mrf.mxu0
      %v735 = vadd.f32 0.0, %v734
      %v736 = vpop.f32.mrf.mxu0
      %737 = vmatprep.mubr.bf16.mxu0 0
      %738 = vmatmul.mubr.bf16.gmra.mxu0 %v644
      %v739 = vpop.f32.mrf.mxu0
      %v740 = vadd.f32 0.0, %v739
      %v741 = vpop.f32.mrf.mxu0
      %v742 = vpop.f32.mrf.mxu0
      %v743 = vadd.f32 0.0, %v742
      %v744 = vpop.f32.mrf.mxu0
      %745 = vdwg.mxu0
      %v748 = vunpack.c.l.b16 %v256
      %v749 = vunpack.c.l.b16 %v257
      %v750 = vpack.c.b16 %v749, %v748
      %v752 = vand.u32 %v750, %v336
      %754 = vmatprep.subr.bf16.mxu0 0
      %755 = vmatpush1.bf16.msra.mxu0 0
      %756 = vmatprep.subr.bf16.mxu0 0
      %757 = vmatpush1.bf16.msra.mxu0 0
      %758 = vmatprep.subr.bf16.mxu0 0
      %759 = vmatpush1.bf16.msra.mxu0 0
      %760 = vmatprep.subr.bf16.mxu0 0
      %761 = vmatpush1.bf16.msra.mxu0 0
      %762 = vmatprep.subr.bf16.mxu0 0
      %763 = vmatpush1.bf16.msra.mxu0 0
      %764 = vmatprep.subr.bf16.mxu0 0
      %765 = vmatpush1.bf16.msra.mxu0 0
      %766 = vmatprep.subr.bf16.mxu0 0
      %767 = vmatpush1.bf16.msra.mxu0 0
      %768 = vmatprep.subr.bf16.mxu0 0
      %769 = vmatpush1.bf16.msra.mxu0 %v752
      %770 = vmatprep.subr.bf16.mxu0 0
      %771 = vmatpush2.bf16.msra.mxu0 0
      %772 = vmatprep.subr.bf16.mxu0 0
      %773 = vmatpush2.bf16.msra.mxu0 0
      %774 = vmatprep.subr.bf16.mxu0 0
      %775 = vmatpush2.bf16.msra.mxu0 0
      %776 = vmatprep.subr.bf16.mxu0 0
      %777 = vmatpush2.bf16.msra.mxu0 0
      %778 = vmatprep.subr.bf16.mxu0 0
      %779 = vmatpush2.bf16.msra.mxu0 0
      %780 = vmatprep.subr.bf16.mxu0 0
      %781 = vmatpush2.bf16.msra.mxu0 0
      %782 = vmatprep.subr.bf16.mxu0 0
      %783 = vmatpush2.bf16.msra.mxu0 0
      %784 = vmatprep.subr.bf16.mxu0 0
      %785 = vmatpush2.bf16.msra.mxu0 0
      %786 = vmatprep.mubr.bf16.mxu0 0
      %787 = vmatmul.mubr.bf16.gmra.mxu0 %v456
      %v788 = vpop.f32.mrf.mxu0
      %v789 = vadd.f32 %v684, %v788
      %v790 = vpop.f32.mrf.mxu0
      %v791 = vpop.f32.mrf.mxu0
      %v792 = vadd.f32 %v687, %v791
      %v793 = vpop.f32.mrf.mxu0
      %794 = vmatprep.mubr.bf16.mxu0 0
      %795 = vmatmul.mubr.bf16.gmra.mxu0 %v310
      %v796 = vpop.f32.mrf.mxu0
      %v797 = vadd.f32 %v692, %v796
      %v798 = vpop.f32.mrf.mxu0
      %v799 = vpop.f32.mrf.mxu0
      %v800 = vadd.f32 %v695, %v799
      %v801 = vpop.f32.mrf.mxu0
      %802 = vmatprep.mubr.bf16.mxu0 0
      %803 = vmatmul.mubr.bf16.gmra.mxu0 %v313
      %v804 = vpop.f32.mrf.mxu0
      %v805 = vadd.f32 %v700, %v804
      %v806 = vpop.f32.mrf.mxu0
      %v807 = vpop.f32.mrf.mxu0
      %v808 = vadd.f32 %v703, %v807
      %v809 = vpop.f32.mrf.mxu0
      %810 = vmatprep.mubr.bf16.mxu0 0
      %811 = vmatmul.mubr.bf16.gmra.mxu0 %v316
      %v812 = vpop.f32.mrf.mxu0
      %v813 = vadd.f32 %v708, %v812
      %v814 = vpop.f32.mrf.mxu0
      %v815 = vpop.f32.mrf.mxu0
      %v816 = vadd.f32 %v711, %v815
      %v817 = vpop.f32.mrf.mxu0
      %818 = vmatprep.mubr.bf16.mxu0 0
      %819 = vmatmul.mubr.bf16.gmra.mxu0 %v319
      %v820 = vpop.f32.mrf.mxu0
      %v821 = vadd.f32 %v716, %v820
      %v822 = vpop.f32.mrf.mxu0
      %v823 = vpop.f32.mrf.mxu0
      %v824 = vadd.f32 %v719, %v823
      %v825 = vpop.f32.mrf.mxu0
      %826 = vmatprep.mubr.bf16.mxu0 0
      %827 = vmatmul.mubr.bf16.gmra.mxu0 %v322
      %v828 = vpop.f32.mrf.mxu0
      %v829 = vadd.f32 %v724, %v828
      %v830 = vpop.f32.mrf.mxu0
      %v831 = vpop.f32.mrf.mxu0
      %v832 = vadd.f32 %v727, %v831
      %v833 = vpop.f32.mrf.mxu0
      %834 = vmatprep.mubr.bf16.mxu0 0
      %835 = vmatmul.mubr.bf16.gmra.mxu0 %v325
      %v836 = vpop.f32.mrf.mxu0
      %v837 = vadd.f32 %v732, %v836
      %v838 = vpop.f32.mrf.mxu0
      %v839 = vpop.f32.mrf.mxu0
      %v840 = vadd.f32 %v735, %v839
      %v841 = vpop.f32.mrf.mxu0
      %842 = vmatprep.mubr.bf16.mxu0 0
      %843 = vmatmul.mubr.bf16.gmra.mxu0 %v328
      %v844 = vpop.f32.mrf.mxu0
      %v845 = vadd.f32 %v740, %v844
      %v846 = vpop.f32.mrf.mxu0
      %v847 = vpop.f32.mrf.mxu0
      %v848 = vadd.f32 %v743, %v847
      %v849 = vpop.f32.mrf.mxu0
      %850 = vdwg.mxu0
      %v851 = vld [vmem:[%s224 + $0x20] sm:$0xf]
      %v852 = vld [vmem:[%s224 + $0x24] sm:$0xf]
      %v853 = vld [vmem:[%s224 + $0x28] sm:$0xf]
      %v854 = vld [vmem:[%s224 + $0x2c] sm:$0xf]
      %v855 = vld [vmem:[%s224 + $0x30] sm:$0xf]
      %v856 = vld [vmem:[%s224 + $0x34] sm:$0xf]
      %v857 = vld [vmem:[%s224 + $0x38] sm:$0xf]
      %v858 = vld [vmem:[%s224 + $0x3c] sm:$0xf]
      %v859 = vld [vmem:[%s224 + $0x40] sm:$0xf]
      %v860 = vld [vmem:[%s224 + $0x44] sm:$0xf]
      %v861 = vld [vmem:[%s224 + $0x48] sm:$0xf]
      %v862 = vld [vmem:[%s224 + $0x4c] sm:$0xf]
      %v863 = vld [vmem:[%s224 + $0x50] sm:$0xf]
      %v864 = vld [vmem:[%s224 + $0x54] sm:$0xf]
      %v865 = vld [vmem:[%s224 + $0x58] sm:$0xf]
      %v866 = vld [vmem:[%s224 + $0x5c] sm:$0xf]
      %s867 = scalar_lea.vmem %s1, 32
      %v868 = vld [vmem:[%s867] sm:$0xf]
      %v869 = vld [vmem:[%s867 + $0x4] sm:$0xf]
      %v886 = vunpack.c.l.b16 %v851
      %v887 = vunpack.c.l.b16 %v852
      %v888 = vunpack.c.l.b16 %v853
      %v889 = vunpack.c.l.b16 %v854
      %v890 = vunpack.c.l.b16 %v855
      %v891 = vunpack.c.l.b16 %v856
      %v892 = vunpack.c.l.b16 %v857
      %v893 = vunpack.c.l.b16 %v858
      %v894 = vunpack.c.l.b16 %v859
      %v895 = vunpack.c.l.b16 %v860
      %v896 = vunpack.c.l.b16 %v861
      %v897 = vunpack.c.l.b16 %v862
      %v898 = vunpack.c.l.b16 %v863
      %v899 = vunpack.c.l.b16 %v864
      %v900 = vunpack.c.l.b16 %v865
      %v901 = vunpack.c.l.b16 %v866
      %v902 = vpack.c.b16 %v887, %v886
      %v903 = vpack.c.b16 %v889, %v888
      %v904 = vpack.c.b16 %v891, %v890
      %v905 = vpack.c.b16 %v893, %v892
      %v906 = vpack.c.b16 %v895, %v894
      %v907 = vpack.c.b16 %v897, %v896
      %v908 = vpack.c.b16 %v899, %v898
      %v909 = vpack.c.b16 %v901, %v900
      %v912 = vunpack.c.l.b16 %v868
      %v913 = vunpack.c.l.b16 %v869
      %v914 = vpack.c.b16 %v913, %v912
      %v916 = vsel %vm308, %v902, 0
      %v919 = vsel %vm308, %v903, 0
      %v922 = vsel %vm308, %v904, 0
      %v925 = vsel %vm308, %v905, 0
      %v928 = vsel %vm308, %v906, 0
      %v931 = vsel %vm308, %v907, 0
      %v934 = vsel %vm308, %v908, 0
      %v937 = vsel %vm308, %v909, 0
      %v940 = vand.u32 %v914, %v336
      %942 = vmatprep.subr.bf16.mxu0 0
      %943 = vmatpush1.bf16.msra.mxu0 0
      %944 = vmatprep.subr.bf16.mxu0 0
      %945 = vmatpush1.bf16.msra.mxu0 0
      %946 = vmatprep.subr.bf16.mxu0 0
      %947 = vmatpush1.bf16.msra.mxu0 0
      %948 = vmatprep.subr.bf16.mxu0 0
      %949 = vmatpush1.bf16.msra.mxu0 0
      %950 = vmatprep.subr.bf16.mxu0 0
      %951 = vmatpush1.bf16.msra.mxu0 0
      %952 = vmatprep.subr.bf16.mxu0 0
      %953 = vmatpush1.bf16.msra.mxu0 0
      %954 = vmatprep.subr.bf16.mxu0 0
      %955 = vmatpush1.bf16.msra.mxu0 0
      %956 = vmatprep.subr.bf16.mxu0 0
      %957 = vmatpush1.bf16.msra.mxu0 %v940
      %958 = vmatprep.subr.bf16.mxu0 0
      %959 = vmatpush2.bf16.msra.mxu0 0
      %960 = vmatprep.subr.bf16.mxu0 0
      %961 = vmatpush2.bf16.msra.mxu0 0
      %962 = vmatprep.subr.bf16.mxu0 0
      %963 = vmatpush2.bf16.msra.mxu0 0
      %964 = vmatprep.subr.bf16.mxu0 0
      %965 = vmatpush2.bf16.msra.mxu0 0
      %966 = vmatprep.subr.bf16.mxu0 0
      %967 = vmatpush2.bf16.msra.mxu0 0
      %968 = vmatprep.subr.bf16.mxu0 0
      %969 = vmatpush2.bf16.msra.mxu0 0
      %970 = vmatprep.subr.bf16.mxu0 0
      %971 = vmatpush2.bf16.msra.mxu0 0
      %972 = vmatprep.subr.bf16.mxu0 0
      %973 = vmatpush2.bf16.msra.mxu0 0
      %974 = vmatprep.mubr.bf16.mxu0 0
      %975 = vmatmul.mubr.bf16.gmra.mxu0 %v916
      %v976 = vpop.f32.mrf.mxu0
      %v977 = vadd.f32 0.0, %v976
      %v978 = vpop.f32.mrf.mxu0
      %v979 = vpop.f32.mrf.mxu0
      %v980 = vadd.f32 0.0, %v979
      %v981 = vpop.f32.mrf.mxu0
      %982 = vmatprep.mubr.bf16.mxu0 0
      %983 = vmatmul.mubr.bf16.gmra.mxu0 %v919
      %v984 = vpop.f32.mrf.mxu0
      %v985 = vadd.f32 0.0, %v984
      %v986 = vpop.f32.mrf.mxu0
      %v987 = vpop.f32.mrf.mxu0
      %v988 = vadd.f32 0.0, %v987
      %v989 = vpop.f32.mrf.mxu0
      %990 = vmatprep.mubr.bf16.mxu0 0
      %991 = vmatmul.mubr.bf16.gmra.mxu0 %v922
      %v992 = vpop.f32.mrf.mxu0
      %v993 = vadd.f32 0.0, %v992
      %v994 = vpop.f32.mrf.mxu0
      %v995 = vpop.f32.mrf.mxu0
      %v996 = vadd.f32 0.0, %v995
      %v997 = vpop.f32.mrf.mxu0
      %998 = vmatprep.mubr.bf16.mxu0 0
      %999 = vmatmul.mubr.bf16.gmra.mxu0 %v925
      %v1000 = vpop.f32.mrf.mxu0
      %v1001 = vadd.f32 0.0, %v1000
      %v1002 = vpop.f32.mrf.mxu0
      %v1003 = vpop.f32.mrf.mxu0
      %v1004 = vadd.f32 0.0, %v1003
      %v1005 = vpop.f32.mrf.mxu0
      %1006 = vmatprep.mubr.bf16.mxu0 0
      %1007 = vmatmul.mubr.bf16.gmra.mxu0 %v928
      %v1008 = vpop.f32.mrf.mxu0
      %v1009 = vadd.f32 0.0, %v1008
      %v1010 = vpop.f32.mrf.mxu0
      %v1011 = vpop.f32.mrf.mxu0
      %v1012 = vadd.f32 0.0, %v1011
      %v1013 = vpop.f32.mrf.mxu0
      %1014 = vmatprep.mubr.bf16.mxu0 0
      %1015 = vmatmul.mubr.bf16.gmra.mxu0 %v931
      %v1016 = vpop.f32.mrf.mxu0
      %v1017 = vadd.f32 0.0, %v1016
      %v1018 = vpop.f32.mrf.mxu0
      %v1019 = vpop.f32.mrf.mxu0
      %v1020 = vadd.f32 0.0, %v1019
      %v1021 = vpop.f32.mrf.mxu0
      %1022 = vmatprep.mubr.bf16.mxu0 0
      %1023 = vmatmul.mubr.bf16.gmra.mxu0 %v934
      %v1024 = vpop.f32.mrf.mxu0
      %v1025 = vadd.f32 0.0, %v1024
      %v1026 = vpop.f32.mrf.mxu0
      %v1027 = vpop.f32.mrf.mxu0
      %v1028 = vadd.f32 0.0, %v1027
      %v1029 = vpop.f32.mrf.mxu0
      %1030 = vmatprep.mubr.bf16.mxu0 0
      %1031 = vmatmul.mubr.bf16.gmra.mxu0 %v937
      %v1032 = vpop.f32.mrf.mxu0
      %v1033 = vadd.f32 0.0, %v1032
      %v1034 = vpop.f32.mrf.mxu0
      %v1035 = vpop.f32.mrf.mxu0
      %v1036 = vadd.f32 0.0, %v1035
      %v1037 = vpop.f32.mrf.mxu0
      %1038 = vdwg.mxu0
      %v1039 = vadd.f32 %v496, %v977
      %v1040 = vadd.f32 %v499, %v980
      %v1041 = vadd.f32 %v504, %v985
      %v1042 = vadd.f32 %v507, %v988
      %v1043 = vadd.f32 %v512, %v993
      %v1044 = vadd.f32 %v515, %v996
      %v1045 = vadd.f32 %v520, %v1001
      %v1046 = vadd.f32 %v523, %v1004
      %v1047 = vadd.f32 %v528, %v1009
      %v1048 = vadd.f32 %v531, %v1012
      %v1049 = vadd.f32 %v536, %v1017
      %v1050 = vadd.f32 %v539, %v1020
      %v1051 = vadd.f32 %v544, %v1025
      %v1052 = vadd.f32 %v547, %v1028
      %v1053 = vadd.f32 %v552, %v1033
      %v1054 = vadd.f32 %v555, %v1036
      %v1055 = vadd.f32 %v1039, %v789
      %v1056 = vadd.f32 %v1040, %v792
      %v1057 = vadd.f32 %v1041, %v797
      %v1058 = vadd.f32 %v1042, %v800
      %v1059 = vadd.f32 %v1043, %v805
      %v1060 = vadd.f32 %v1044, %v808
      %v1061 = vadd.f32 %v1045, %v813
      %v1062 = vadd.f32 %v1046, %v816
      %v1063 = vadd.f32 %v1047, %v821
      %v1064 = vadd.f32 %v1048, %v824
      %v1065 = vadd.f32 %v1049, %v829
      %v1066 = vadd.f32 %v1050, %v832
      %v1067 = vadd.f32 %v1051, %v837
      %v1068 = vadd.f32 %v1052, %v840
      %v1069 = vadd.f32 %v1053, %v845
      %v1070 = vadd.f32 %v1054, %v848
      %v1071 = vld [vmem:[%s2] sm:$0x1]
      %v1073 = vlaneseq
      %v1074 = vshrl.u32 %v1073, 7
      %v1075 = vsub.s32 0, %v1074
      %v1076 = vrot.slane %v1071, %v1075
      %v1078 = vmul.f32 %v1055, %v1076
      %v1079 = vmul.f32 %v1056, %v1076
      %v1080 = vmul.f32 %v1057, %v1076
      %v1081 = vmul.f32 %v1058, %v1076
      %v1082 = vmul.f32 %v1059, %v1076
      %v1083 = vmul.f32 %v1060, %v1076
      %v1084 = vmul.f32 %v1061, %v1076
      %v1085 = vmul.f32 %v1062, %v1076
      %v1086 = vmul.f32 %v1063, %v1076
      %v1087 = vmul.f32 %v1064, %v1076
      %v1088 = vmul.f32 %v1065, %v1076
      %v1089 = vmul.f32 %v1066, %v1076
      %v1090 = vmul.f32 %v1067, %v1076
      %v1091 = vmul.f32 %v1068, %v1076
      %v1092 = vmul.f32 %v1069, %v1076
      %v1093 = vmul.f32 %v1070, %v1076
      %v1094 = vld [vmem:[%s3] sm:$0x1]
      %v1096 = vlaneseq
      %v1097 = vshrl.u32 %v1096, 7
      %v1098 = vsub.s32 0, %v1097
      %v1099 = vrot.slane %v1094, %v1098
      %v1101 = vadd.f32 %v1078, %v1099
      %v1102 = vadd.f32 %v1079, %v1099
      %v1103 = vadd.f32 %v1080, %v1099
      %v1104 = vadd.f32 %v1081, %v1099
      %v1105 = vadd.f32 %v1082, %v1099
      %v1106 = vadd.f32 %v1083, %v1099
      %v1107 = vadd.f32 %v1084, %v1099
      %v1108 = vadd.f32 %v1085, %v1099
      %v1109 = vadd.f32 %v1086, %v1099
      %v1110 = vadd.f32 %v1087, %v1099
      %v1111 = vadd.f32 %v1088, %v1099
      %v1112 = vadd.f32 %v1089, %v1099
      %v1113 = vadd.f32 %v1090, %v1099
      %v1114 = vadd.f32 %v1091, %v1099
      %v1115 = vadd.f32 %v1092, %v1099
      %v1116 = vadd.f32 %v1093, %v1099
      %vm1117 = vcmask 523264
      %1118 = vst.msk [vmem:[%s233] sm:$0xff] %vm1117, %v1101
      %1119 = vst.msk [vmem:[%s233 + $0x8] sm:$0xff] %vm1117, %v1102
      %1120 = vst.msk [vmem:[%s233 + $0x10] sm:$0xff] %vm1117, %v1103
      %1121 = vst.msk [vmem:[%s233 + $0x18] sm:$0xff] %vm1117, %v1104
      %1122 = vst.msk [vmem:[%s233 + $0x20] sm:$0xff] %vm1117, %v1105
      %1123 = vst.msk [vmem:[%s233 + $0x28] sm:$0xff] %vm1117, %v1106
      %1124 = vst.msk [vmem:[%s233 + $0x30] sm:$0xff] %vm1117, %v1107
      %1125 = vst.msk [vmem:[%s233 + $0x38] sm:$0xff] %vm1117, %v1108
      %1126 = vst.msk [vmem:[%s233 + $0x40] sm:$0xff] %vm1117, %v1109
      %1127 = vst.msk [vmem:[%s233 + $0x48] sm:$0xff] %vm1117, %v1110
      %1128 = vst.msk [vmem:[%s233 + $0x50] sm:$0xff] %vm1117, %v1111
      %1129 = vst.msk [vmem:[%s233 + $0x58] sm:$0xff] %vm1117, %v1112
      %1130 = vst.msk [vmem:[%s233 + $0x60] sm:$0xff] %vm1117, %v1113
      %1131 = vst.msk [vmem:[%s233 + $0x68] sm:$0xff] %vm1117, %v1114
      %1132 = vst.msk [vmem:[%s233 + $0x70] sm:$0xff] %vm1117, %v1115
      %1133 = vst.msk [vmem:[%s233 + $0x78] sm:$0xff] %vm1117, %v1116
      %p1134 = scmp.lt.s32.totalorder %s19, 1
      %s1135 = scalar_select %p1134, %s19, 1
      %p1136 = scmp.lt.s32.totalorder %s20, 1
      %s1137 = scalar_select %p1136, %s20, 1
      %s1138 = smul.addr %s1137, 16
      %s1139 = smul.addr %s1135, 32
      %s1140 = sadd.s32 %s1138, %s1139
      %s1141 = smul.addr %s1140, 8
      %s1142 = scalar_lea.vmem %s4, %s1141
      // Predicated region
      $region37: #{_conv5x5_fused.1} parent=35 // pred_check
        %p1143 = pneg %p138
      $region38: #{_conv5x5_fused.1} parent=35 // pred_check_branch
        %1145 = sbr.rel (%p1143) target = $region40
      $region39: #{_conv5x5_fused.1} parent=35 // pred_region
        _
      $region40: #{_conv5x5_fused.1} parent=35 // pred_fallthru
        _
    $region36: #{_conv5x5_fused.1} parent=5 // pred_fallthru
      _
    %p1146 = scmp.le.s32.totalorder 2, %s10
    // Predicated region
    $region41: #{_conv5x5_fused.1} parent=5 // pred_check
      %p1147 = pneg %p1146
    $region42: #{_conv5x5_fused.1} parent=5 // pred_check_branch
      %1149 = sbr.rel (%p1147) target = $region44
    $region43: #{_conv5x5_fused.1} parent=5 // pred_region
      %s1150 = ssub.s32 %s10, 2
      // Predicated region
      $region45: #{_conv5x5_fused.1} parent=43 // pred_check
        %p1151 = pneg %p144
      $region46: #{_conv5x5_fused.1} parent=43 // pred_check_branch
        %1153 = sbr.rel (%p1151) target = $region48
      $region47: #{_conv5x5_fused.1} parent=43 // pred_region
        %p1154 = scmp.lt.s32.totalorder %s21, 1
        %s1155 = scalar_select %p1154, %s21, 1
        %p1156 = scmp.lt.s32.totalorder %s22, 1
        %s1157 = scalar_select %p1156, %s22, 1
        %s1158 = smul.addr %s1157, 16
        %s1159 = smul.addr %s1155, 32
        %s1160 = sadd.s32 %s1158, %s1159
        %s1161 = smul.addr %s1160, 8
        %s1162 = scalar_lea.vmem %s4, %s1161
      $region48: #{_conv5x5_fused.1} parent=43 // pred_fallthru
        _
    $region44: #{_conv5x5_fused.1} parent=5 // pred_fallthru
      _
  $region6: #{_conv5x5_fused.1} parent=0 // loop_footer
    %s14 = sadd.s32 1, %s10
  $region7: #{_conv5x5_fused.1} parent=0 // loop_footer_branch
    %9 = sbr.rel target = $region3
  $region8: #{_conv5x5_fused.1} parent=0 // loop_exit
    _

</llo_original>
